<compile_context>
chip_gen: v6e
topology: v6e:2x2x1
jax: 0.10.0
libtpu: 0.0.40
codegen_flags: <defaults>
</compile_context>

<pallas_src>
import functools
import math

import jax
import jax.numpy as jnp
from jax.experimental import pallas as pl
from jax.experimental.pallas import tpu as pltpu


# ---------------------------------------------------------------------------
# Hardware-derived defaults.
# ---------------------------------------------------------------------------

def _device_kind():
    try:
        return jax.devices()[0].device_kind.lower()
    except Exception:
        return ""


def _is_pre_v6(kind):
    return any(t in kind for t in ("v2", "v3", "v4", "v5"))


def _default_exp_dtype(kind):
    # v5e and older have no bf16 VPU/EUP -> keep the softmax exp in f32 there.
    return jnp.float32 if (_is_pre_v6(kind) or not kind) else jnp.bfloat16


def _vmem_limit_bytes():
    # Per-generation budget: <=80% of physical VMEM, capped at 100 MiB
    # (v5e/v6e: 128 MiB physical -> 100 MiB; v7x: 64 MiB -> ~51 MiB).
    try:
        cap = pltpu.get_tpu_info().vmem_capacity_bytes
        return int(min(cap * 0.8, 100 * 1024 * 1024))
    except Exception:
        return 48 * 1024 * 1024  # conservative fallback, safe on every chip


def _pick_tile(n, cap, multiple):
    """Largest tile <= cap that divides n, preferring `multiple`-aligned sizes.

    Falls back to coarser alignment and finally to the whole extent
    (a full-extent block is always layout-legal)."""
    if n <= cap:
        return n
    for m in (multiple, 16, 8):
        t = (cap // m) * m
        while t >= m:
            if n % t == 0:
                return t
            t -= m
    # TODO(synk): awkward N (no aligned divisor) falls back to a
    # whole-sequence block; pad N host-side (with key masking) instead if
    # this would exceed the VMEM budget at large N.
    return n


# ---------------------------------------------------------------------------
# Kernel 1: fused QKV projection (one pass over x; Q pre-scaled via Wq).
# ---------------------------------------------------------------------------

def _qkv_proj_kernel(x_ref, wq_ref, wk_ref, wv_ref, q_ref, k_ref, v_ref):
    # x_ref: (1, tr, C) bf16 ; w*: (C, C) bf16 (x @ W layout, single-buffered)
    # q/k/v out: (1, tr, C) bf16.  All accumulation in f32 on the MXU.
    x = x_ref[0]
    q_ref[0] = jnp.dot(x, wq_ref[...],
                       preferred_element_type=jnp.float32).astype(q_ref.dtype)
    k_ref[0] = jnp.dot(x, wk_ref[...],
                       preferred_element_type=jnp.float32).astype(k_ref.dtype)
    v_ref[0] = jnp.dot(x, wv_ref[...],
                       preferred_element_type=jnp.float32).astype(v_ref.dtype)


# ---------------------------------------------------------------------------
# Kernel 2: flash attention (online softmax) + fused output projection.
# ---------------------------------------------------------------------------

def _flash_attn_kernel(q_ref, k_ref, v_ref, wproj_ref, bproj_ref, o_ref,
                       acc_scr, m_scr, l_scr,
                       *, num_heads, head_dim, exp_dtype, mxu_dtype):
    # q_ref:    (1, tq, C)  pre-projected, pre-scaled Q rows (bf16)
    # k_ref:    (1, tk, C)  pre-projected K rows (bf16)
    # v_ref:    (1, tk, C)  pre-projected V rows (bf16)
    # wproj:    (C, C)      proj weight transposed (bf16, single-buffered)
    # bproj:    (1, C)      proj bias (f32, single-buffered)
    # o_ref:    (1, tq, C)
    # acc_scr:  (tq, C)     unnormalized context, heads in column slices (f32)
    # m_scr:    (H, tq, 1)  running row max per head (f32)
    # l_scr:    (H, tq, 1)  running softmax denominator per head (f32)
    ki = pl.program_id(2)
    nk = pl.num_programs(2)
    H, D = num_heads, head_dim

    # ---- init once per (batch, q-tile): reset online-softmax state.
    @pl.when(ki == 0)
    def _init():
        acc_scr[...] = jnp.zeros(acc_scr.shape, acc_scr.dtype)
        m_scr[...] = jnp.full(m_scr.shape, -jnp.inf, m_scr.dtype)
        l_scr[...] = jnp.zeros(l_scr.shape, l_scr.dtype)

    q = q_ref[0]  # (tq, C) bf16, 1/sqrt(D) already folded into Wq
    k = k_ref[0]  # (tk, C) bf16
    v = v_ref[0]  # (tk, C) bf16

    # Per-head online softmax on column slices of the (rows, C) projections —
    # no 3-D transposes; C (the lane dim) stays the last axis throughout.
    # TODO(synk): for head_dim < 128 these column slices are lane-partial; at
    # real model sizes switch the accumulator layout to (H, tq, pad128(D)) or
    # rescale head pairs so acc loads/stores are 128-lane dense.
    for h in range(H):
        sl = slice(h * D, (h + 1) * D)
        s = jax.lax.dot_general(q[:, sl], k[:, sl],
                                (((1,), (1,)), ((), ())),
                                preferred_element_type=jnp.float32)   # (tq, tk)
        m_prev = m_scr[h]                                             # (tq, 1)
        m_new = jnp.maximum(m_prev, jnp.max(s, axis=-1, keepdims=True))
        alpha = jnp.exp(m_prev - m_new)                               # (tq, 1) f32
        # exp in bf16 on v6e/v7x (EUP throughput), f32 on v5e; state stays f32.
        p = jnp.exp((s - m_new).astype(exp_dtype))                    # (tq, tk)
        l_scr[h] = alpha * l_scr[h] + jnp.sum(p.astype(jnp.float32),
                                              axis=-1, keepdims=True)
        acc_scr[:, sl] = alpha * acc_scr[:, sl] + jnp.dot(
            p.astype(mxu_dtype), v[:, sl], preferred_element_type=jnp.float32)
        m_scr[h] = m_new

    # ---- finalize (last kv tile): normalize, merge heads, output projection.
    @pl.when(ki == nk - 1)
    def _fin():
        for h in range(H):
            sl = slice(h * D, (h + 1) * D)
            inv_l = pl.reciprocal(l_scr[h], approx=True)              # EUP slot
            acc_scr[:, sl] = acc_scr[:, sl] * inv_l
        ctx = acc_scr[...].astype(mxu_dtype)                          # (tq, C)
        out = jnp.dot(ctx, wproj_ref[...],
                      preferred_element_type=jnp.float32) + bproj_ref[0]
        o_ref[0] = out.astype(o_ref.dtype)


# ---------------------------------------------------------------------------
# Host-side wrappers.
# ---------------------------------------------------------------------------

def prepare_params(wqkv, wproj, bproj, *, num_heads, mxu_dtype=jnp.bfloat16):
    """Torch-layout nn.Linear weights -> kernel layout.  Do this ONCE per
    model (hoisted out of the per-call path).  The 1/sqrt(head_dim) attention
    scale is folded into Wq here, so there is no in-kernel scale multiply."""
    C = wproj.shape[0]
    D = C // num_heads
    scale = 1.0 / math.sqrt(D)
    wqkv_t = wqkv.T                                       # (C, 3C): x @ W layout
    wq = (wqkv_t[:, 0 * C:1 * C] * scale).astype(mxu_dtype)
    wk = wqkv_t[:, 1 * C:2 * C].astype(mxu_dtype)
    wv = wqkv_t[:, 2 * C:3 * C].astype(mxu_dtype)
    wproj_t = wproj.T.astype(mxu_dtype)                   # (C, C)
    bproj2 = bproj.reshape(1, C).astype(jnp.float32)
    return wq, wk, wv, wproj_t, bproj2


def attention_forward(x, params, *, num_heads, q_tile=256, kv_tile=None,
                      mxu_dtype=jnp.bfloat16, exp_dtype=None):
    """x: (B, N, C); params from prepare_params()."""
    wq, wk, wv, wproj_t, bproj2 = params
    B, N, C = x.shape
    assert C % num_heads == 0
    head_dim = C // num_heads
    out_dtype = x.dtype

    kind = _device_kind()
    if exp_dtype is None:
        exp_dtype = _default_exp_dtype(kind)
    if kv_tile is None:
        kv_tile = 128 if _is_pre_v6(kind) else 256      # match MXU depth
    vmem_limit = _vmem_limit_bytes()

    tq = _pick_tile(N, q_tile, 16)     # sublane-friendly (bf16 packs 16 rows)
    tk = _pick_tile(N, kv_tile, 128)   # lane-dense score / PV tiles
    tr = _pick_tile(N, 512, 16)        # qkv-projection row tile

    # TODO(synk): pad C to a multiple of 128 host-side at real model sizes so
    # the (1, tq, C) output block and (tq, C) scratch are lane-dense.

    x_mxu = x.astype(mxu_dtype)

    # ---- Pass 1: QKV projection (one GEMM over x; no per-q-tile recompute).
    q, k, v = pl.pallas_call(
        _qkv_proj_kernel,
        out_shape=(jax.ShapeDtypeStruct((B, N, C), mxu_dtype),
                   jax.ShapeDtypeStruct((B, N, C), mxu_dtype),
                   jax.ShapeDtypeStruct((B, N, C), mxu_dtype)),
        grid_spec=pltpu.PrefetchScalarGridSpec(
            num_scalar_prefetch=0,
            grid=(B, N // tr),
            in_specs=[
                pl.BlockSpec((1, tr, C), lambda b, i: (b, i, 0)),
                pl.BlockSpec((C, C), lambda b, i: (0, 0),
                             pipeline_mode=pl.Buffered(1)),
                pl.BlockSpec((C, C), lambda b, i: (0, 0),
                             pipeline_mode=pl.Buffered(1)),
                pl.BlockSpec((C, C), lambda b, i: (0, 0),
                             pipeline_mode=pl.Buffered(1)),
            ],
            out_specs=[
                pl.BlockSpec((1, tr, C), lambda b, i: (b, i, 0)),
                pl.BlockSpec((1, tr, C), lambda b, i: (b, i, 0)),
                pl.BlockSpec((1, tr, C), lambda b, i: (b, i, 0)),
            ]),
        compiler_params=pltpu.CompilerParams(
            dimension_semantics=("parallel", "parallel"),
            vmem_limit_bytes=vmem_limit),
    )(x_mxu, wq, wk, wv)

    # ---- Pass 2: flash attention + fused output projection.
    kernel = functools.partial(_flash_attn_kernel,
                               num_heads=num_heads, head_dim=head_dim,
                               exp_dtype=exp_dtype, mxu_dtype=mxu_dtype)

    return pl.pallas_call(
        kernel,
        out_shape=jax.ShapeDtypeStruct((B, N, C), out_dtype),
        grid_spec=pltpu.PrefetchScalarGridSpec(
            num_scalar_prefetch=0,
            grid=(B, N // tq, N // tk),
            in_specs=[
                # Q rows: constant across the inner kv axis -> single buffer.
                pl.BlockSpec((1, tq, C), lambda b, qi, ki: (b, qi, 0),
                             pipeline_mode=pl.Buffered(1)),
                pl.BlockSpec((1, tk, C), lambda b, qi, ki: (b, ki, 0)),  # K
                pl.BlockSpec((1, tk, C), lambda b, qi, ki: (b, ki, 0)),  # V
                # Grid-constant proj weight / bias: single buffer.
                pl.BlockSpec((C, C), lambda b, qi, ki: (0, 0),
                             pipeline_mode=pl.Buffered(1)),
                pl.BlockSpec((1, C), lambda b, qi, ki: (0, 0),
                             pipeline_mode=pl.Buffered(1)),
            ],
            out_specs=pl.BlockSpec((1, tq, C), lambda b, qi, ki: (b, qi, 0)),
            scratch_shapes=[
                pltpu.VMEM((tq, C), jnp.float32),              # context acc
                pltpu.VMEM((num_heads, tq, 1), jnp.float32),   # running max m
                pltpu.VMEM((num_heads, tq, 1), jnp.float32),   # running denom l
            ]),
        compiler_params=pltpu.CompilerParams(
            dimension_semantics=("parallel", "parallel", "arbitrary"),
            vmem_limit_bytes=vmem_limit),
    )(q, k, v, wproj_t, bproj2)


def reference_forward(x, wqkv, wproj, bproj, *, num_heads):
    """Pure-JAX f32 reference mirroring the PyTorch forward."""
    B, N, C = x.shape
    D = C // num_heads
    qkv = jnp.einsum('bnc,oc->bno', x, wqkv)                  # (B, N, 3C), no bias
    qkv = qkv.reshape(B, N, 3, num_heads, D).transpose(2, 0, 3, 1, 4)
    q, k, v = qkv[0], qkv[1], qkv[2]                          # (B, H, N, D)
    s = jnp.einsum('bhqd,bhkd->bhqk', q, k) / (D ** 0.5)
    p = jax.nn.softmax(s, axis=-1)
    ctx = jnp.einsum('bhqk,bhkd->bhqd', p, v)
    ctx = ctx.transpose(0, 2, 1, 3).reshape(B, N, C)
    return jnp.einsum('bnc,oc->bno', ctx, wproj) + bproj


if __name__ == "__main__":
    B, N, C = 2, 8, 32
    num_heads = 8

    key = jax.random.PRNGKey(0)
    kx, kqkv, kproj, kb = jax.random.split(key, 4)

    x = jax.random.normal(kx, (B, N, C), dtype=jnp.float32)
    # nn.Linear weights: (out_features, in_features)
    wqkv = jax.random.normal(kqkv, (3 * C, C), dtype=jnp.float32) * 0.05
    wproj = jax.random.normal(kproj, (C, C), dtype=jnp.float32) * 0.05
    bproj = jax.random.normal(kb, (C,), dtype=jnp.float32) * 0.05

    params = prepare_params(wqkv, wproj, bproj, num_heads=num_heads)
    out = attention_forward(x, params, num_heads=num_heads)
    out = jax.block_until_ready(out)

    ref = reference_forward(x, wqkv, wproj, bproj, num_heads=num_heads)
    assert out.shape == (B, N, C)
    # bf16 MXU operands / bf16 exp (on v6e+) / approx reciprocal vs the f32
    # reference -> loosened tolerance.
    assert jnp.allclose(out, ref, atol=2e-2, rtol=2e-2), "mismatch vs reference"

    print("KERNEL_OK")
</pallas_src>

<mosaic_0001>
module attributes {stable_mosaic.version = 11 : i64} {
  func.func @_qkv_proj_kernel(%arg0: i32, %arg1: i32, %arg2: memref<1x8x32xbf16, #tpu.memory_space<vmem>>, %arg3: memref<32x32xbf16, #tpu.memory_space<vmem>>, %arg4: memref<32x32xbf16, #tpu.memory_space<vmem>>, %arg5: memref<32x32xbf16, #tpu.memory_space<vmem>>, %arg6: memref<1x8x32xbf16, #tpu.memory_space<vmem>>, %arg7: memref<1x8x32xbf16, #tpu.memory_space<vmem>>, %arg8: memref<1x8x32xbf16, #tpu.memory_space<vmem>>) attributes {dimension_semantics = [#tpu.dimension_semantics<parallel>, #tpu.dimension_semantics<parallel>], iteration_bounds = array<i64: 2, 1>, scalar_prefetch = 0 : i64, scratch_operands = 0 : i64, tpu.core_type = #tpu.core_type<tc>, window_params = [{transform_indices = @transform_0, window_bounds = array<i64: 1, 8, 32>}, {pipeline_mode = #tpu.pipeline_mode<synchronous>, transform_indices = @transform_1, window_bounds = array<i64: 32, 32>}, {pipeline_mode = #tpu.pipeline_mode<synchronous>, transform_indices = @transform_2, window_bounds = array<i64: 32, 32>}, {pipeline_mode = #tpu.pipeline_mode<synchronous>, transform_indices = @transform_3, window_bounds = array<i64: 32, 32>}, {transform_indices = @transform_4, window_bounds = array<i64: 1, 8, 32>}, {transform_indices = @transform_5, window_bounds = array<i64: 1, 8, 32>}, {transform_indices = @transform_6, window_bounds = array<i64: 1, 8, 32>}]} {
    %c0 = arith.constant 0 : index
    %c0_0 = arith.constant 0 : index
    %c0_1 = arith.constant 0 : index
    %0 = vector.load %arg2[%c0, %c0_0, %c0_1] : memref<1x8x32xbf16, #tpu.memory_space<vmem>>, vector<1x8x32xbf16>
    %1 = vector.shape_cast %0 : vector<1x8x32xbf16> to vector<8x32xbf16>
    %c0_2 = arith.constant 0 : index
    %c0_3 = arith.constant 0 : index
    %2 = vector.load %arg3[%c0_2, %c0_3] : memref<32x32xbf16, #tpu.memory_space<vmem>>, vector<32x32xbf16>
    %cst = arith.constant dense<0.000000e+00> : vector<8x32xf32>
    %3 = tpu.matmul %1, %2, %cst {dimension_numbers = #tpu.dot_dimension_numbers<[1], [0], [0], [1], [0, 0, 1, 1], [], []>} : vector<8x32xbf16>, vector<32x32xbf16>, vector<8x32xf32> -> vector<8x32xf32>
    %4 = arith.truncf %3 : vector<8x32xf32> to vector<8x32xbf16>
    %c0_4 = arith.constant 0 : index
    %c0_5 = arith.constant 0 : index
    %c0_6 = arith.constant 0 : index
    %5 = vector.load %arg6[%c0_4, %c0_5, %c0_6] : memref<1x8x32xbf16, #tpu.memory_space<vmem>>, vector<1x8x32xbf16>
    %6 = vector.shape_cast %5 : vector<1x8x32xbf16> to vector<8x32xbf16>
    %7 = vector.shape_cast %4 : vector<8x32xbf16> to vector<1x8x32xbf16>
    tpu.vector_store %arg6[%c0_4, %c0_5, %c0_6], %7 {strides = array<i32>} : memref<1x8x32xbf16, #tpu.memory_space<vmem>>, vector<1x8x32xbf16>,
    %c0_7 = arith.constant 0 : index
    %c0_8 = arith.constant 0 : index
    %8 = vector.load %arg4[%c0_7, %c0_8] : memref<32x32xbf16, #tpu.memory_space<vmem>>, vector<32x32xbf16>
    %cst_9 = arith.constant dense<0.000000e+00> : vector<8x32xf32>
    %9 = tpu.matmul %1, %8, %cst_9 {dimension_numbers = #tpu.dot_dimension_numbers<[1], [0], [0], [1], [0, 0, 1, 1], [], []>} : vector<8x32xbf16>, vector<32x32xbf16>, vector<8x32xf32> -> vector<8x32xf32>
    %10 = arith.truncf %9 : vector<8x32xf32> to vector<8x32xbf16>
    %c0_10 = arith.constant 0 : index
    %c0_11 = arith.constant 0 : index
    %c0_12 = arith.constant 0 : index
    %11 = vector.load %arg7[%c0_10, %c0_11, %c0_12] : memref<1x8x32xbf16, #tpu.memory_space<vmem>>, vector<1x8x32xbf16>
    %12 = vector.shape_cast %11 : vector<1x8x32xbf16> to vector<8x32xbf16>
    %13 = vector.shape_cast %10 : vector<8x32xbf16> to vector<1x8x32xbf16>
    tpu.vector_store %arg7[%c0_10, %c0_11, %c0_12], %13 {strides = array<i32>} : memref<1x8x32xbf16, #tpu.memory_space<vmem>>, vector<1x8x32xbf16>,
    %c0_13 = arith.constant 0 : index
    %c0_14 = arith.constant 0 : index
    %14 = vector.load %arg5[%c0_13, %c0_14] : memref<32x32xbf16, #tpu.memory_space<vmem>>, vector<32x32xbf16>
    %cst_15 = arith.constant dense<0.000000e+00> : vector<8x32xf32>
    %15 = tpu.matmul %1, %14, %cst_15 {dimension_numbers = #tpu.dot_dimension_numbers<[1], [0], [0], [1], [0, 0, 1, 1], [], []>} : vector<8x32xbf16>, vector<32x32xbf16>, vector<8x32xf32> -> vector<8x32xf32>
    %16 = arith.truncf %15 : vector<8x32xf32> to vector<8x32xbf16>
    %c0_16 = arith.constant 0 : index
    %c0_17 = arith.constant 0 : index
    %c0_18 = arith.constant 0 : index
    %17 = vector.load %arg8[%c0_16, %c0_17, %c0_18] : memref<1x8x32xbf16, #tpu.memory_space<vmem>>, vector<1x8x32xbf16>
    %18 = vector.shape_cast %17 : vector<1x8x32xbf16> to vector<8x32xbf16>
    %19 = vector.shape_cast %16 : vector<8x32xbf16> to vector<1x8x32xbf16>
    tpu.vector_store %arg8[%c0_16, %c0_17, %c0_18], %19 {strides = array<i32>} : memref<1x8x32xbf16, #tpu.memory_space<vmem>>, vector<1x8x32xbf16>,
    return
  }
  func.func @transform_0(%arg0: i32, %arg1: i32) -> (i32, i32, i32) {
    %c0_i32 = arith.constant 0 : i32
    %c0_i32_0 = arith.constant 0 : i32
    return %arg0, %arg1, %c0_i32 : i32, i32, i32
  }
  func.func @transform_1(%arg0: i32, %arg1: i32) -> (i32, i32) {
    %c0_i32 = arith.constant 0 : i32
    %c0_i32_0 = arith.constant 0 : i32
    %c0_i32_1 = arith.constant 0 : i32
    return %c0_i32, %c0_i32_0 : i32, i32
  }
  func.func @transform_2(%arg0: i32, %arg1: i32) -> (i32, i32) {
    %c0_i32 = arith.constant 0 : i32
    %c0_i32_0 = arith.constant 0 : i32
    %c0_i32_1 = arith.constant 0 : i32
    return %c0_i32, %c0_i32_0 : i32, i32
  }
  func.func @transform_3(%arg0: i32, %arg1: i32) -> (i32, i32) {
    %c0_i32 = arith.constant 0 : i32
    %c0_i32_0 = arith.constant 0 : i32
    %c0_i32_1 = arith.constant 0 : i32
    return %c0_i32, %c0_i32_0 : i32, i32
  }
  func.func @transform_4(%arg0: i32, %arg1: i32) -> (i32, i32, i32) {
    %c0_i32 = arith.constant 0 : i32
    %c0_i32_0 = arith.constant 0 : i32
    return %arg0, %arg1, %c0_i32 : i32, i32, i32
  }
  func.func @transform_5(%arg0: i32, %arg1: i32) -> (i32, i32, i32) {
    %c0_i32 = arith.constant 0 : i32
    %c0_i32_0 = arith.constant 0 : i32
    return %arg0, %arg1, %c0_i32 : i32, i32, i32
  }
  func.func @transform_6(%arg0: i32, %arg1: i32) -> (i32, i32, i32) {
    %c0_i32 = arith.constant 0 : i32
    %c0_i32_0 = arith.constant 0 : i32
    return %arg0, %arg1, %c0_i32 : i32, i32, i32
  }
}

</mosaic_0001>

<llo_original>
// kernel: tpu_custom_call.1
$region0: #{tpu_custom_call.1}
  #allocation0 [shape = 'u32[]', space=smem, size = 0x4, offset = 0x4, fixed_abs, tag = 'smem constant byte address 0x4 - core index']
  #allocation1 [shape = 'u32[144,128]{1,0:T(1,128)}', space=vmem, size = 0x12000, scoped, tag = 'internal scratch']
  %s0 = inlined_call_operand.hbm [shape: bf16[2,8,32], index: 0, kind: input, shape index: {}]
  %s1 = inlined_call_operand.hbm [shape: bf16[32,32], index: 1, kind: input, shape index: {}]
  %s2 = inlined_call_operand.hbm [shape: bf16[32,32], index: 2, kind: input, shape index: {}]
  %s3 = inlined_call_operand.hbm [shape: bf16[32,32], index: 3, kind: input, shape index: {}]
  %s4 = inlined_call_operand.hbm [shape: bf16[2,8,32], index: 4, kind: output, shape index: {0}]
  %s5 = inlined_call_operand.hbm [shape: bf16[2,8,32], index: 5, kind: output, shape index: {1}]
  %s6 = inlined_call_operand.hbm [shape: bf16[2,8,32], index: 6, kind: output, shape index: {2}]
  %7 = xla_tuple %s4, %s5, %s6
  %s8 = sld [smem:[#allocation0]]
  $region81: #{tpu_custom_call.1} parent=0
    _
  %s10 = ssub.s32 1, %s8
  %s11 = scalar_select 0, %s10, %s8
  $region1: #{tpu_custom_call.1} parent=0
    #allocation2 [shape = 'u8[4096]{0}', space=vmem, size = 0x1000, scoped, tag = 'input window, operand 0']
    #allocation3 [shape = 's32[2]{0}', space=sflag, size = 0x8, scoped, tag = 'scoped memory for tpu_custom_call.1']
    #allocation4 [shape = 's32[2]{0}', space=sflag, size = 0x8, scoped, tag = 'scoped memory for tpu_custom_call.1']
    #allocation5 [shape = 'u8[8192]{0}', space=vmem, size = 0x2000, scoped, tag = 'input window, operand 1, single buffered']
    #allocation6 [shape = 's32[1]{0}', space=sflag, size = 0x4, scoped, tag = 'scoped memory for tpu_custom_call.1']
    #allocation7 [shape = 'u8[8192]{0}', space=vmem, size = 0x2000, scoped, tag = 'input window, operand 2, single buffered']
    #allocation8 [shape = 'u8[8192]{0}', space=vmem, size = 0x2000, scoped, tag = 'input window, operand 3, single buffered']
    #allocation9 [shape = 's32[1]{0}', space=sflag, size = 0x4, scoped, tag = 'scoped memory for tpu_custom_call.1']
    #allocation10 [shape = 'u8[4096]{0}', space=vmem, size = 0x1000, scoped, tag = 'output window, operand 0']
    #allocation11 [shape = 'u8[4096]{0}', space=vmem, size = 0x1000, scoped, tag = 'output window, operand 1']
    #allocation12 [shape = 's32[2]{0}', space=sflag, size = 0x8, scoped, tag = 'scoped memory for tpu_custom_call.1']
    #allocation13 [shape = 'u8[4096]{0}', space=vmem, size = 0x1000, scoped, tag = 'output window, operand 2']
    %12 = vsyncpa [#allocation3], 0
    %s13 = scalar_lea.sflag [#allocation3], 1
    %14 = vsyncpa %s13, 0
    %15 = vsyncpa [#allocation6], 0
    %16 = vsyncpa [#allocation9], 0
    %17 = vsyncpa [#allocation4], 0
    %s18 = scalar_lea.sflag [#allocation4], 1
    %19 = vsyncpa %s18, 0
    %20 = vsyncpa [#allocation12], 0
    %s21 = scalar_lea.sflag [#allocation12], 1
    %22 = vsyncpa %s21, 0
    loop: start=0, step=1, limit=4
    $region2: #{tpu_custom_call.1} parent=1 // loop_pre_header
      _
    $region3: #{tpu_custom_call.1} parent=1 // loop_header
      %s24 = sphi 0, %s28
      %p25 = scmp.ge.s32.totalorder %s24, 4
      %s31 = sphi 0, %s43
      %s32 = sphi 0, %s39
      %s33 = sphi 0, %s31
      %s34 = sphi 0, %s32
      %s35 = sphi 0, %s33
      %s36 = sphi 0, %s34
      %s48 = sphi 0, %s50
      %s51 = sphi 0, %s48
      %s52 = sphi 0, %s51
      %s68 = sphi 0, %s52
      %s72 = sphi 0, %s72
      %s74 = sphi 0, %s72
      %s75 = sphi 0, %s74
      %s89 = sphi 0, %s75
      %s93 = sphi 0, %s93
      %s95 = sphi 0, %s93
      %s96 = sphi 0, %s95
      %s110 = sphi 0, %s96
      %s114 = sphi 0, %s114
      %s116 = sphi 0, %s114
      %s117 = sphi 0, %s116
      %s131 = sphi 0, %s117
      %s139 = sphi 0, %s141
      %s142 = sphi 0, %s139
      %s143 = sphi 0, %s142
      %s159 = sphi 0, %s143
      %s167 = sphi 0, %s169
      %s170 = sphi 0, %s167
      %s171 = sphi 0, %s170
      %s187 = sphi 0, %s171
      %s195 = sphi 0, %s197
      %s198 = sphi 0, %s195
      %s199 = sphi 0, %s198
      %s215 = sphi 0, %s199
    $region4: #{tpu_custom_call.1} parent=1 // loop_header_branch
      %27 = sbr.rel (%p25) target = $region8
    $region5: #{tpu_custom_call.1} parent=1 // loop_body
      %s29 = ssub.s32 %s24, 1
      %s30 = ssub.s32 %s24, 2
      %s37 = sadd.s32 1, %s32
      %p38 = scmp.ge.s32.totalorder %s37, 1
      %s39 = scalar_select %p38, 0, %s37
      %s40 = sadd.s32 1, %s31
      %s41 = scalar_select %p38, %s40, %s31
      %p42 = scmp.ge.s32.totalorder %s41, 2
      %s43 = scalar_select %p42, 0, %s41
      %s44 = ssub.s32 %s31, %s43
      %s45 = ssub.s32 %s32, %s39
      %s46 = sor.u32 %s44, %s45
      %p47 = scmp.eq.s32.totalorder %s46, 0
      %s49 = sadd.s32 %s48, 1
      %s50 = scalar_select %p47, %s48, %s49
      %p53 = pneg %p47
      %p54 = scmp.eq.s32.totalorder %s24, 1
      %p55 = por %p53, %p54
      %p56 = scmp.ne.s32.totalorder %s48, %s51
      %p57 = scmp.eq.s32.totalorder %s24, 0
      %p58 = por %p56, %p57
      %p59 = scmp.ne.s32.totalorder %s48, %s51
      %p60 = scmp.eq.s32.totalorder %s29, 1
      %p61 = por %p59, %p60
      %p62 = scmp.ne.s32.totalorder %s51, %s52
      %p63 = scmp.eq.s32.totalorder %s29, 0
      %p64 = por %p62, %p63
      %p65 = scmp.ne.s32.totalorder %s51, %s52
      %p66 = scmp.eq.s32.totalorder %s30, 1
      %p67 = por %p65, %p66
      %p69 = scmp.ne.s32.totalorder %s52, %s68
      %p70 = scmp.eq.s32.totalorder %s30, 0
      %p71 = por %p69, %p70
      %s73 = sadd.s32 %s72, 1
      %p76 = scmp.eq.s32.totalorder %s24, 1
      %p77 = scmp.ne.s32.totalorder %s72, %s74
      %p78 = scmp.eq.s32.totalorder %s24, 0
      %p79 = por %p77, %p78
      %p80 = scmp.ne.s32.totalorder %s72, %s74
      %p81 = scmp.eq.s32.totalorder %s29, 1
      %p82 = por %p80, %p81
      %p83 = scmp.ne.s32.totalorder %s74, %s75
      %p84 = scmp.eq.s32.totalorder %s29, 0
      %p85 = por %p83, %p84
      %p86 = scmp.ne.s32.totalorder %s74, %s75
      %p87 = scmp.eq.s32.totalorder %s30, 1
      %p88 = por %p86, %p87
      %p90 = scmp.ne.s32.totalorder %s75, %s89
      %p91 = scmp.eq.s32.totalorder %s30, 0
      %p92 = por %p90, %p91
      %s94 = sadd.s32 %s93, 1
      %p97 = scmp.eq.s32.totalorder %s24, 1
      %p98 = scmp.ne.s32.totalorder %s93, %s95
      %p99 = scmp.eq.s32.totalorder %s24, 0
      %p100 = por %p98, %p99
      %p101 = scmp.ne.s32.totalorder %s93, %s95
      %p102 = scmp.eq.s32.totalorder %s29, 1
      %p103 = por %p101, %p102
      %p104 = scmp.ne.s32.totalorder %s95, %s96
      %p105 = scmp.eq.s32.totalorder %s29, 0
      %p106 = por %p104, %p105
      %p107 = scmp.ne.s32.totalorder %s95, %s96
      %p108 = scmp.eq.s32.totalorder %s30, 1
      %p109 = por %p107, %p108
      %p111 = scmp.ne.s32.totalorder %s96, %s110
      %p112 = scmp.eq.s32.totalorder %s30, 0
      %p113 = por %p111, %p112
      %s115 = sadd.s32 %s114, 1
      %p118 = scmp.eq.s32.totalorder %s24, 1
      %p119 = scmp.ne.s32.totalorder %s114, %s116
      %p120 = scmp.eq.s32.totalorder %s24, 0
      %p121 = por %p119, %p120
      %p122 = scmp.ne.s32.totalorder %s114, %s116
      %p123 = scmp.eq.s32.totalorder %s29, 1
      %p124 = por %p122, %p123
      %p125 = scmp.ne.s32.totalorder %s116, %s117
      %p126 = scmp.eq.s32.totalorder %s29, 0
      %p127 = por %p125, %p126
      %p128 = scmp.ne.s32.totalorder %s116, %s117
      %p129 = scmp.eq.s32.totalorder %s30, 1
      %p130 = por %p128, %p129
      %p132 = scmp.ne.s32.totalorder %s117, %s131
      %p133 = scmp.eq.s32.totalorder %s30, 0
      %p134 = por %p132, %p133
      %s135 = ssub.s32 %s31, %s43
      %s136 = ssub.s32 %s32, %s39
      %s137 = sor.u32 %s135, %s136
      %p138 = scmp.eq.s32.totalorder %s137, 0
      %s140 = sadd.s32 %s139, 1
      %s141 = scalar_select %p138, %s139, %s140
      %p144 = pneg %p138
      %p145 = scmp.eq.s32.totalorder %s24, 1
      %p146 = por %p144, %p145
      %p147 = scmp.ne.s32.totalorder %s139, %s142
      %p148 = scmp.eq.s32.totalorder %s24, 0
      %p149 = por %p147, %p148
      %p150 = scmp.ne.s32.totalorder %s139, %s142
      %p151 = scmp.eq.s32.totalorder %s29, 1
      %p152 = por %p150, %p151
      %p153 = scmp.ne.s32.totalorder %s142, %s143
      %p154 = scmp.eq.s32.totalorder %s29, 0
      %p155 = por %p153, %p154
      %p156 = scmp.ne.s32.totalorder %s142, %s143
      %p157 = scmp.eq.s32.totalorder %s30, 1
      %p158 = por %p156, %p157
      %p160 = scmp.ne.s32.totalorder %s143, %s159
      %p161 = scmp.eq.s32.totalorder %s30, 0
      %p162 = por %p160, %p161
      %s163 = ssub.s32 %s31, %s43
      %s164 = ssub.s32 %s32, %s39
      %s165 = sor.u32 %s163, %s164
      %p166 = scmp.eq.s32.totalorder %s165, 0
      %s168 = sadd.s32 %s167, 1
      %s169 = scalar_select %p166, %s167, %s168
      %p172 = pneg %p166
      %p173 = scmp.eq.s32.totalorder %s24, 1
      %p174 = por %p172, %p173
      %p175 = scmp.ne.s32.totalorder %s167, %s170
      %p176 = scmp.eq.s32.totalorder %s24, 0
      %p177 = por %p175, %p176
      %p178 = scmp.ne.s32.totalorder %s167, %s170
      %p179 = scmp.eq.s32.totalorder %s29, 1
      %p180 = por %p178, %p179
      %p181 = scmp.ne.s32.totalorder %s170, %s171
      %p182 = scmp.eq.s32.totalorder %s29, 0
      %p183 = por %p181, %p182
      %p184 = scmp.ne.s32.totalorder %s170, %s171
      %p185 = scmp.eq.s32.totalorder %s30, 1
      %p186 = por %p184, %p185
      %p188 = scmp.ne.s32.totalorder %s171, %s187
      %p189 = scmp.eq.s32.totalorder %s30, 0
      %p190 = por %p188, %p189
      %s191 = ssub.s32 %s31, %s43
      %s192 = ssub.s32 %s32, %s39
      %s193 = sor.u32 %s191, %s192
      %p194 = scmp.eq.s32.totalorder %s193, 0
      %s196 = sadd.s32 %s195, 1
      %s197 = scalar_select %p194, %s195, %s196
      %p200 = pneg %p194
      %p201 = scmp.eq.s32.totalorder %s24, 1
      %p202 = por %p200, %p201
      %p203 = scmp.ne.s32.totalorder %s195, %s198
      %p204 = scmp.eq.s32.totalorder %s24, 0
      %p205 = por %p203, %p204
      %p206 = scmp.ne.s32.totalorder %s195, %s198
      %p207 = scmp.eq.s32.totalorder %s29, 1
      %p208 = por %p206, %p207
      %p209 = scmp.ne.s32.totalorder %s198, %s199
      %p210 = scmp.eq.s32.totalorder %s29, 0
      %p211 = por %p209, %p210
      %p212 = scmp.ne.s32.totalorder %s198, %s199
      %p213 = scmp.eq.s32.totalorder %s30, 1
      %p214 = por %p212, %p213
      %p216 = scmp.ne.s32.totalorder %s199, %s215
      %p217 = scmp.eq.s32.totalorder %s30, 0
      %p218 = por %p216, %p217
      %p219 = scmp.le.s32.totalorder 1, %s24
      %p220 = scmp.lt.s32.totalorder %s24, 3
      %p221 = pnand %p219, %p220
      %p222 = pneg %p221
      // Predicated region
      $region9: #{tpu_custom_call.1} parent=5 // pred_check
        _
      $region10: #{tpu_custom_call.1} parent=5 // pred_check_branch
        %224 = sbr.rel (%p221) target = $region12
      $region11: #{tpu_custom_call.1} parent=5 // pred_region
        %s225 = ssub.s32 %s24, 1
        // Predicated region
        $region13: #{tpu_custom_call.1} parent=11 // pred_check
          %p226 = pneg %p85
        $region14: #{tpu_custom_call.1} parent=11 // pred_check_branch
          %228 = sbr.rel (%p226) target = $region16
        $region15: #{tpu_custom_call.1} parent=11 // pred_region
          %s230 = ssub.s32 256, 256
          %231 = vsyncadd [#allocation6], %s230
          %s232 = sshll.u32 [#allocation5], 4
          %s233 = int_to_ptr.vmem [resolvable:$true] %s232
          %238 = dma.hbm_to_vmem [thread:$0]  %s1, 256, %s233, [#allocation6], 64, 64, 4
        $region16: #{tpu_custom_call.1} parent=11 // pred_fallthru
          _
        // Predicated region
        $region17: #{tpu_custom_call.1} parent=11 // pred_check
          %p239 = pneg %p106
        $region18: #{tpu_custom_call.1} parent=11 // pred_check_branch
          %241 = sbr.rel (%p239) target = $region20
        $region19: #{tpu_custom_call.1} parent=11 // pred_region
          %s243 = ssub.s32 256, 256
          %244 = vsyncadd [#allocation6], %s243
          %s245 = sshll.u32 [#allocation7], 4
          %s246 = int_to_ptr.vmem [resolvable:$true] %s245
          %251 = dma.hbm_to_vmem [thread:$0]  %s2, 256, %s246, [#allocation6], 64, 64, 4
        $region20: #{tpu_custom_call.1} parent=11 // pred_fallthru
          _
        // Predicated region
        $region21: #{tpu_custom_call.1} parent=11 // pred_check
          %p252 = pneg %p127
        $region22: #{tpu_custom_call.1} parent=11 // pred_check_branch
          %254 = sbr.rel (%p252) target = $region24
        $region23: #{tpu_custom_call.1} parent=11 // pred_region
          %s256 = ssub.s32 256, 256
          %257 = vsyncadd [#allocation9], %s256
          %s258 = sshll.u32 [#allocation8], 4
          %s259 = int_to_ptr.vmem [resolvable:$true] %s258
          %264 = dma.hbm_to_vmem [thread:$0]  %s3, 256, %s259, [#allocation9], 64, 64, 4
        $region24: #{tpu_custom_call.1} parent=11 // pred_fallthru
          _
      $region12: #{tpu_custom_call.1} parent=5 // pred_fallthru
        _
      %p265 = scmp.lt.s32.totalorder %s24, 2
      // Predicated region
      $region25: #{tpu_custom_call.1} parent=5 // pred_check
        %p266 = pneg %p265
      $region26: #{tpu_custom_call.1} parent=5 // pred_check_branch
        %268 = sbr.rel (%p266) target = $region28
      $region27: #{tpu_custom_call.1} parent=5 // pred_region
        // Predicated region
        $region29: #{tpu_custom_call.1} parent=27 // pred_check
          %p269 = pneg %p58
        $region30: #{tpu_custom_call.1} parent=27 // pred_check_branch
          %271 = sbr.rel (%p269) target = $region32
        $region31: #{tpu_custom_call.1} parent=27 // pred_region
          %s272 = sand.u32 %s48, 1
          %s273 = scalar_lea.sflag [#allocation3], %s272
          %s274 = sand.u32 %s48, 1
          %s275 = smul.addr %s274, 4
          %s276 = scalar_lea.vmem [#allocation2], %s275
          %s278 = ssub.s32 64, 64
          %279 = vsyncadd %s273, %s278
          %s280 = sadd.s32 %s32, %s31
          %s281 = smul.addr %s280, 64
          %s282 = scalar_lea.hbm %s0, %s281
          %s284 = sshll.u32 %s276, 4
          %s285 = int_to_ptr.vmem [resolvable:$true] %s284
          %287 = dma.hbm_to_vmem [thread:$0]  %s282, 64, %s285, %s273
        $region32: #{tpu_custom_call.1} parent=27 // pred_fallthru
          _
      $region28: #{tpu_custom_call.1} parent=5 // pred_fallthru
        _
      %p288 = scmp.le.s32.totalorder 1, %s24
      %p289 = scmp.lt.s32.totalorder %s24, 3
      %p290 = pnand %p288, %p289
      %p291 = pneg %p290
      // Predicated region
      $region33: #{tpu_custom_call.1} parent=5 // pred_check
        _
      $region34: #{tpu_custom_call.1} parent=5 // pred_check_branch
        %293 = sbr.rel (%p290) target = $region36
      $region35: #{tpu_custom_call.1} parent=5 // pred_region
        %s294 = ssub.s32 %s24, 1
        %s295 = sand.u32 %s51, 1
        %s296 = scalar_lea.sflag [#allocation3], %s295
        %s297 = sand.u32 %s51, 1
        %s298 = smul.addr %s297, 4
        %s299 = scalar_lea.vmem [#allocation2], %s298
        // Predicated region
        $region37: #{tpu_custom_call.1} parent=35 // pred_check
          %p300 = pneg %p64
        $region38: #{tpu_custom_call.1} parent=35 // pred_check_branch
          %302 = sbr.rel (%p300) target = $region40
        $region39: #{tpu_custom_call.1} parent=35 // pred_region
          %303 = dma.done %s296, 64
        $region40: #{tpu_custom_call.1} parent=35 // pred_fallthru
          _
        // Predicated region
        $region41: #{tpu_custom_call.1} parent=35 // pred_check
          %p304 = pneg %p85
        $region42: #{tpu_custom_call.1} parent=35 // pred_check_branch
          %306 = sbr.rel (%p304) target = $region44
        $region43: #{tpu_custom_call.1} parent=35 // pred_region
          %307 = dma.done [#allocation6], 256
        $region44: #{tpu_custom_call.1} parent=35 // pred_fallthru
          _
        // Predicated region
        $region45: #{tpu_custom_call.1} parent=35 // pred_check
          %p308 = pneg %p106
        $region46: #{tpu_custom_call.1} parent=35 // pred_check_branch
          %310 = sbr.rel (%p308) target = $region48
        $region47: #{tpu_custom_call.1} parent=35 // pred_region
          %311 = dma.done [#allocation6], 256
        $region48: #{tpu_custom_call.1} parent=35 // pred_fallthru
          _
        // Predicated region
        $region49: #{tpu_custom_call.1} parent=35 // pred_check
          %p312 = pneg %p127
        $region50: #{tpu_custom_call.1} parent=35 // pred_check_branch
          %314 = sbr.rel (%p312) target = $region52
        $region51: #{tpu_custom_call.1} parent=35 // pred_region
          %315 = dma.done [#allocation9], 256
        $region52: #{tpu_custom_call.1} parent=35 // pred_fallthru
          _
        %s316 = sand.u32 %s51, 1
        %s317 = scalar_lea.sflag [#allocation3], %s316
        %s318 = sand.u32 %s51, 1
        %s319 = smul.addr %s318, 4
        %s320 = scalar_lea.vmem [#allocation2], %s319
        %p321 = pneg %p64
        %p322 = pneg %p61
        %p323 = pneg %p85
        %p324 = pneg %p82
        %p325 = pneg %p106
        %p326 = pneg %p103
        %p327 = pneg %p127
        %p328 = pneg %p124
        %p329 = pneg %p155
        %p330 = pneg %p152
        %s331 = sand.u32 %s142, 1
        %s332 = scalar_lea.sflag [#allocation4], %s331
        %s333 = sand.u32 %s142, 1
        %s334 = smul.addr %s333, 4
        %s335 = scalar_lea.vmem [#allocation10], %s334
        %p336 = pneg %p183
        %p337 = pneg %p180
        %s338 = sand.u32 %s29, 1
        %s339 = scalar_lea.sflag [#allocation12], %s338
        %s340 = sand.u32 %s170, 1
        %s341 = smul.addr %s340, 4
        %s342 = scalar_lea.vmem [#allocation11], %s341
        %p343 = pneg %p211
        %p344 = pneg %p208
        %s345 = sand.u32 %s29, 1
        %s346 = scalar_lea.sflag [#allocation12], %s345
        %s347 = sand.u32 %s198, 1
        %s348 = smul.addr %s347, 4
        %s349 = scalar_lea.vmem [#allocation13], %s348
        %v351 = vld [vmem:[%s299] sm:$0xf]
        %v352 = vld [vmem:[#allocation5] sm:$0xf]
        %v353 = vld [vmem:[#allocation5 + $0x4] sm:$0xf]
        %v354 = vld [vmem:[#allocation5 + $0x8] sm:$0xf]
        %v355 = vld [vmem:[#allocation5 + $0xc] sm:$0xf]
        %v360 = vunpack.c.l.b16 %v352
        %v361 = vunpack.c.l.b16 %v353
        %v362 = vunpack.c.l.b16 %v354
        %v363 = vunpack.c.l.b16 %v355
        %v364 = vpack.c.b16 %v361, %v360
        %v365 = vpack.c.b16 %v363, %v362
        %vm368 = vcmask 261120
        %v370 = vsel %vm368, %v351, 0
        %372 = vmatprep.subr.bf16.mxu0 0
        %373 = vmatpush1.bf16.msra.mxu0 0
        %374 = vmatprep.subr.bf16.mxu0 0
        %375 = vmatpush1.bf16.msra.mxu0 0
        %376 = vmatprep.subr.bf16.mxu0 0
        %377 = vmatpush1.bf16.msra.mxu0 0
        %378 = vmatprep.subr.bf16.mxu0 0
        %379 = vmatpush1.bf16.msra.mxu0 0
        %380 = vmatprep.subr.bf16.mxu0 0
        %381 = vmatpush1.bf16.msra.mxu0 0
        %382 = vmatprep.subr.bf16.mxu0 0
        %383 = vmatpush1.bf16.msra.mxu0 0
        %384 = vmatprep.subr.bf16.mxu0 0
        %385 = vmatpush1.bf16.msra.mxu0 %v365
        %386 = vmatprep.subr.bf16.mxu0 0
        %387 = vmatpush1.bf16.msra.mxu0 %v364
        %388 = vmatprep.subr.bf16.mxu0 0
        %389 = vmatpush2.bf16.msra.mxu0 0
        %390 = vmatprep.subr.bf16.mxu0 0
        %391 = vmatpush2.bf16.msra.mxu0 0
        %392 = vmatprep.subr.bf16.mxu0 0
        %393 = vmatpush2.bf16.msra.mxu0 0
        %394 = vmatprep.subr.bf16.mxu0 0
        %395 = vmatpush2.bf16.msra.mxu0 0
        %396 = vmatprep.subr.bf16.mxu0 0
        %397 = vmatpush2.bf16.msra.mxu0 0
        %398 = vmatprep.subr.bf16.mxu0 0
        %399 = vmatpush2.bf16.msra.mxu0 0
        %400 = vmatprep.subr.bf16.mxu0 0
        %401 = vmatpush2.bf16.msra.mxu0 0
        %402 = vmatprep.subr.bf16.mxu0 0
        %403 = vmatpush2.bf16.msra.mxu0 0
        %404 = vmatprep.mubr.bf16.mxu0 0
        %405 = vmatmul.mubr.bf16.gmra.mxu0 %v370
        %v406 = vpop.f32.mrf.mxu0
        %v407 = vadd.f32 0.0, %v406
        %v408 = vpop.f32.mrf.mxu0
        %v409 = vpop.f32.mrf.mxu0
        %v410 = vpop.f32.mrf.mxu0
        %411 = vdwg.mxu0
        %v412 = vpack.c.bf16 %v407, %v407
        %vm413 = vcmask 257024
        %414 = vst.msk [vmem:[%s335] sm:$0xf] %vm413, %v412
        %v415 = vld [vmem:[#allocation7] sm:$0xf]
        %v416 = vld [vmem:[#allocation7 + $0x4] sm:$0xf]
        %v417 = vld [vmem:[#allocation7 + $0x8] sm:$0xf]
        %v418 = vld [vmem:[#allocation7 + $0xc] sm:$0xf]
        %v423 = vunpack.c.l.b16 %v415
        %v424 = vunpack.c.l.b16 %v416
        %v425 = vunpack.c.l.b16 %v417
        %v426 = vunpack.c.l.b16 %v418
        %v427 = vpack.c.b16 %v424, %v423
        %v428 = vpack.c.b16 %v426, %v425
        %431 = vmatprep.subr.bf16.mxu0 0
        %432 = vmatpush1.bf16.msra.mxu0 0
        %433 = vmatprep.subr.bf16.mxu0 0
        %434 = vmatpush1.bf16.msra.mxu0 0
        %435 = vmatprep.subr.bf16.mxu0 0
        %436 = vmatpush1.bf16.msra.mxu0 0
        %437 = vmatprep.subr.bf16.mxu0 0
        %438 = vmatpush1.bf16.msra.mxu0 0
        %439 = vmatprep.subr.bf16.mxu0 0
        %440 = vmatpush1.bf16.msra.mxu0 0
        %441 = vmatprep.subr.bf16.mxu0 0
        %442 = vmatpush1.bf16.msra.mxu0 0
        %443 = vmatprep.subr.bf16.mxu0 0
        %444 = vmatpush1.bf16.msra.mxu0 %v428
        %445 = vmatprep.subr.bf16.mxu0 0
        %446 = vmatpush1.bf16.msra.mxu0 %v427
        %447 = vmatprep.subr.bf16.mxu0 0
        %448 = vmatpush2.bf16.msra.mxu0 0
        %449 = vmatprep.subr.bf16.mxu0 0
        %450 = vmatpush2.bf16.msra.mxu0 0
        %451 = vmatprep.subr.bf16.mxu0 0
        %452 = vmatpush2.bf16.msra.mxu0 0
        %453 = vmatprep.subr.bf16.mxu0 0
        %454 = vmatpush2.bf16.msra.mxu0 0
        %455 = vmatprep.subr.bf16.mxu0 0
        %456 = vmatpush2.bf16.msra.mxu0 0
        %457 = vmatprep.subr.bf16.mxu0 0
        %458 = vmatpush2.bf16.msra.mxu0 0
        %459 = vmatprep.subr.bf16.mxu0 0
        %460 = vmatpush2.bf16.msra.mxu0 0
        %461 = vmatprep.subr.bf16.mxu0 0
        %462 = vmatpush2.bf16.msra.mxu0 0
        %463 = vmatprep.mubr.bf16.mxu0 0
        %464 = vmatmul.mubr.bf16.gmra.mxu0 %v370
        %v465 = vpop.f32.mrf.mxu0
        %v466 = vadd.f32 0.0, %v465
        %v467 = vpop.f32.mrf.mxu0
        %v468 = vpop.f32.mrf.mxu0
        %v469 = vpop.f32.mrf.mxu0
        %470 = vdwg.mxu0
        %v471 = vpack.c.bf16 %v466, %v466
        %472 = vst.msk [vmem:[%s342] sm:$0xf] %vm413, %v471
        %v473 = vld [vmem:[#allocation8] sm:$0xf]
        %v474 = vld [vmem:[#allocation8 + $0x4] sm:$0xf]
        %v475 = vld [vmem:[#allocation8 + $0x8] sm:$0xf]
        %v476 = vld [vmem:[#allocation8 + $0xc] sm:$0xf]
        %v481 = vunpack.c.l.b16 %v473
        %v482 = vunpack.c.l.b16 %v474
        %v483 = vunpack.c.l.b16 %v475
        %v484 = vunpack.c.l.b16 %v476
        %v485 = vpack.c.b16 %v482, %v481
        %v486 = vpack.c.b16 %v484, %v483
        %489 = vmatprep.subr.bf16.mxu0 0
        %490 = vmatpush1.bf16.msra.mxu0 0
        %491 = vmatprep.subr.bf16.mxu0 0
        %492 = vmatpush1.bf16.msra.mxu0 0
        %493 = vmatprep.subr.bf16.mxu0 0
        %494 = vmatpush1.bf16.msra.mxu0 0
        %495 = vmatprep.subr.bf16.mxu0 0
        %496 = vmatpush1.bf16.msra.mxu0 0
        %497 = vmatprep.subr.bf16.mxu0 0
        %498 = vmatpush1.bf16.msra.mxu0 0
        %499 = vmatprep.subr.bf16.mxu0 0
        %500 = vmatpush1.bf16.msra.mxu0 0
        %501 = vmatprep.subr.bf16.mxu0 0
        %502 = vmatpush1.bf16.msra.mxu0 %v486
        %503 = vmatprep.subr.bf16.mxu0 0
        %504 = vmatpush1.bf16.msra.mxu0 %v485
        %505 = vmatprep.subr.bf16.mxu0 0
        %506 = vmatpush2.bf16.msra.mxu0 0
        %507 = vmatprep.subr.bf16.mxu0 0
        %508 = vmatpush2.bf16.msra.mxu0 0
        %509 = vmatprep.subr.bf16.mxu0 0
        %510 = vmatpush2.bf16.msra.mxu0 0
        %511 = vmatprep.subr.bf16.mxu0 0
        %512 = vmatpush2.bf16.msra.mxu0 0
        %513 = vmatprep.subr.bf16.mxu0 0
        %514 = vmatpush2.bf16.msra.mxu0 0
        %515 = vmatprep.subr.bf16.mxu0 0
        %516 = vmatpush2.bf16.msra.mxu0 0
        %517 = vmatprep.subr.bf16.mxu0 0
        %518 = vmatpush2.bf16.msra.mxu0 0
        %519 = vmatprep.subr.bf16.mxu0 0
        %520 = vmatpush2.bf16.msra.mxu0 0
        %521 = vmatprep.mubr.bf16.mxu0 0
        %522 = vmatmul.mubr.bf16.gmra.mxu0 %v370
        %v523 = vpop.f32.mrf.mxu0
        %v524 = vadd.f32 0.0, %v523
        %v525 = vpop.f32.mrf.mxu0
        %v526 = vpop.f32.mrf.mxu0
        %v527 = vpop.f32.mrf.mxu0
        %528 = vdwg.mxu0
        %v529 = vpack.c.bf16 %v524, %v524
        %530 = vst.msk [vmem:[%s349] sm:$0xf] %vm413, %v529
        %s531 = sand.u32 %s142, 1
        %s532 = scalar_lea.sflag [#allocation4], %s531
        %s533 = sand.u32 %s142, 1
        %s534 = smul.addr %s533, 4
        %s535 = scalar_lea.vmem [#allocation10], %s534
        %s536 = sand.u32 %s29, 1
        %s537 = scalar_lea.sflag [#allocation12], %s536
        %s538 = sand.u32 %s170, 1
        %s539 = smul.addr %s538, 4
        %s540 = scalar_lea.vmem [#allocation11], %s539
        %s541 = sand.u32 %s29, 1
        %s542 = scalar_lea.sflag [#allocation12], %s541
        %s543 = sand.u32 %s198, 1
        %s544 = smul.addr %s543, 4
        %s545 = scalar_lea.vmem [#allocation13], %s544
        // Predicated region
        $region53: #{tpu_custom_call.1} parent=35 // pred_check
          %p546 = pneg %p152
        $region54: #{tpu_custom_call.1} parent=35 // pred_check_branch
          %548 = sbr.rel (%p546) target = $region56
        $region55: #{tpu_custom_call.1} parent=35 // pred_region
          %s550 = ssub.s32 64, 64
          %551 = vsyncadd %s532, %s550
          %s552 = sadd.s32 %s34, %s33
          %s553 = smul.addr %s552, 64
          %s554 = scalar_lea.hbm %s4, %s553
          %s556 = sshll.u32 %s535, 4
          %s557 = int_to_ptr.vmem [resolvable:$true] %s556
          %559 = dma.vmem_to_hbm [thread:$0]  %s557, 64, %s554, %s532
        $region56: #{tpu_custom_call.1} parent=35 // pred_fallthru
          _
        // Predicated region
        $region57: #{tpu_custom_call.1} parent=35 // pred_check
          %p560 = pneg %p180
        $region58: #{tpu_custom_call.1} parent=35 // pred_check_branch
          %562 = sbr.rel (%p560) target = $region60
        $region59: #{tpu_custom_call.1} parent=35 // pred_region
          %s564 = ssub.s32 64, 64
          %565 = vsyncadd %s537, %s564
          %s566 = sadd.s32 %s34, %s33
          %s567 = smul.addr %s566, 64
          %s568 = scalar_lea.hbm %s5, %s567
          %s570 = sshll.u32 %s540, 4
          %s571 = int_to_ptr.vmem [resolvable:$true] %s570
          %573 = dma.vmem_to_hbm [thread:$0]  %s571, 64, %s568, %s537
        $region60: #{tpu_custom_call.1} parent=35 // pred_fallthru
          _
        // Predicated region
        $region61: #{tpu_custom_call.1} parent=35 // pred_check
          %p574 = pneg %p208
        $region62: #{tpu_custom_call.1} parent=35 // pred_check_branch
          %576 = sbr.rel (%p574) target = $region64
        $region63: #{tpu_custom_call.1} parent=35 // pred_region
          %s578 = ssub.s32 64, 64
          %579 = vsyncadd %s542, %s578
          %s580 = sadd.s32 %s34, %s33
          %s581 = smul.addr %s580, 64
          %s582 = scalar_lea.hbm %s6, %s581
          %s584 = sshll.u32 %s545, 4
          %s585 = int_to_ptr.vmem [resolvable:$true] %s584
          %587 = dma.vmem_to_hbm [thread:$0]  %s585, 64, %s582, %s542
        $region64: #{tpu_custom_call.1} parent=35 // pred_fallthru
          _
      $region36: #{tpu_custom_call.1} parent=5 // pred_fallthru
        _
      %p588 = scmp.le.s32.totalorder 2, %s24
      // Predicated region
      $region65: #{tpu_custom_call.1} parent=5 // pred_check
        %p589 = pneg %p588
      $region66: #{tpu_custom_call.1} parent=5 // pred_check_branch
        %591 = sbr.rel (%p589) target = $region68
      $region67: #{tpu_custom_call.1} parent=5 // pred_region
        %s592 = ssub.s32 %s24, 2
        // Predicated region
        $region69: #{tpu_custom_call.1} parent=67 // pred_check
          %p593 = pneg %p158
        $region70: #{tpu_custom_call.1} parent=67 // pred_check_branch
          %595 = sbr.rel (%p593) target = $region72
        $region71: #{tpu_custom_call.1} parent=67 // pred_region
          %s596 = sand.u32 %s143, 1
          %s597 = scalar_lea.sflag [#allocation4], %s596
          %s598 = sand.u32 %s143, 1
          %s599 = smul.addr %s598, 4
          %s600 = scalar_lea.vmem [#allocation10], %s599
          %601 = dma.done %s597, 64
        $region72: #{tpu_custom_call.1} parent=67 // pred_fallthru
          _
        // Predicated region
        $region73: #{tpu_custom_call.1} parent=67 // pred_check
          %p602 = pneg %p186
        $region74: #{tpu_custom_call.1} parent=67 // pred_check_branch
          %604 = sbr.rel (%p602) target = $region76
        $region75: #{tpu_custom_call.1} parent=67 // pred_region
          %s605 = sand.u32 %s30, 1
          %s606 = scalar_lea.sflag [#allocation12], %s605
          %s607 = sand.u32 %s171, 1
          %s608 = smul.addr %s607, 4
          %s609 = scalar_lea.vmem [#allocation11], %s608
          %610 = dma.done %s606, 64
        $region76: #{tpu_custom_call.1} parent=67 // pred_fallthru
          _
        // Predicated region
        $region77: #{tpu_custom_call.1} parent=67 // pred_check
          %p611 = pneg %p214
        $region78: #{tpu_custom_call.1} parent=67 // pred_check_branch
          %613 = sbr.rel (%p611) target = $region80
        $region79: #{tpu_custom_call.1} parent=67 // pred_region
          %s614 = sand.u32 %s30, 1
          %s615 = scalar_lea.sflag [#allocation12], %s614
          %s616 = sand.u32 %s199, 1
          %s617 = smul.addr %s616, 4
          %s618 = scalar_lea.vmem [#allocation13], %s617
          %619 = dma.done %s615, 64
        $region80: #{tpu_custom_call.1} parent=67 // pred_fallthru
          _
      $region68: #{tpu_custom_call.1} parent=5 // pred_fallthru
        _
    $region6: #{tpu_custom_call.1} parent=1 // loop_footer
      %s28 = sadd.s32 1, %s24
    $region7: #{tpu_custom_call.1} parent=1 // loop_footer_branch
      %23 = sbr.rel target = $region3
    $region8: #{tpu_custom_call.1} parent=1 // loop_exit
      _
    %620 = vsyncpa [#allocation3], 1
    %s621 = scalar_lea.sflag [#allocation3], 1
    %622 = vsyncpa %s621, 1
    %623 = vsyncpa [#allocation6], 1
    %624 = vsyncpa [#allocation9], 1
    %625 = vsyncpa [#allocation4], 1
    %s626 = scalar_lea.sflag [#allocation4], 1
    %627 = vsyncpa %s626, 1
    %628 = vsyncpa [#allocation12], 1
    %s629 = scalar_lea.sflag [#allocation12], 1
    %630 = vsyncpa %s629, 1

</llo_original>
